<compile_context>
chip_gen: v7x
topology: tpu7x:2x2x1
jax: 0.10.0
libtpu: 0.0.40
codegen_flags: <defaults>
</compile_context>

<pallas_src>
import math
from functools import partial

import jax
import jax.numpy as jnp
from jax import lax
from jax.experimental import pallas as pl
from jax.experimental.pallas import tpu as pltpu


def _mha_kernel(x_ref, wqkv_ref, wo_ref, bo_ref, o_ref, *,
                num_heads, head_dim, mxu_dtype):
    # x_ref:    (Bt, T, d_in)       wqkv_ref: (d_in, 3*d_out)
    # wo_ref:   (d_out, d_out)      bo_ref:   (1, d_out)
    # o_ref:    (Bt, T, d_out)
    Bt, T, d_in = x_ref.shape
    H = num_heads
    d_out = H * head_dim
    f32 = jnp.float32
    cast = (lambda a: a) if mxu_dtype is None else (lambda a: a.astype(mxu_dtype))

    # ---- fused QKV projection over all Bt*T rows: one wide MXU matmul ----------
    x2 = x_ref[...].reshape(Bt * T, d_in)                 # leading-dim merge (layout-safe)
    qkv = jnp.dot(cast(x2), cast(wqkv_ref[...]),
                  preferred_element_type=f32)             # (Bt*T, 3*d_out)

    scale = 1.0 / math.sqrt(head_dim)
    neg_big = jnp.float32(-1e30)                          # finite "-inf" for masking

    # static causal mask (key idx > query idx), broadcast over all (batch, head)
    row = lax.broadcasted_iota(jnp.int32, (1, T, T), 1)   # query idx
    col = lax.broadcasted_iota(jnp.int32, (1, T, T), 2)   # key idx
    causal = col > row                                    # (1, T, T)

    # (Bt*H, T, hd) views via aligned lane slices + leading-axis stack
    def gather(col_off):
        return jnp.stack(
            [qkv[bi * T:(bi + 1) * T,
                 col_off + h * head_dim: col_off + (h + 1) * head_dim]
             for bi in range(Bt) for h in range(H)], axis=0)

    q3 = gather(0) * scale                                # fold softmax scale into q
    k3 = gather(d_out)
    v3 = gather(2 * d_out)

    # batched scores over all (batch, head): (Bt*H, Tq, Tk)
    s = jnp.einsum('nqd,nkd->nqk', cast(q3), cast(k3),
                   preferred_element_type=f32)
    s = jnp.where(causal, neg_big, s)

    # numerically-stable softmax numerator (normalization deferred until after PV)
    m = jnp.max(s, axis=-1, keepdims=True)                # (N, Tq, 1)
    e = jnp.exp(s - m)
    l = jnp.sum(e, axis=-1, keepdims=True)                # (N, Tq, 1)

    # TODO(synk): nn.Dropout on attention weights skipped (p=0.0 / eval identity).

    # PV first, then normalize the small (T, hd) context (EUP reciprocal)
    ctx3 = jnp.einsum('nqk,nkd->nqd', cast(e), cast(v3),
                      preferred_element_type=f32)         # (N, Tq, hd)
    ctx3 = ctx3 * pl.reciprocal(l, approx=True)

    # concat heads back per batch row block -> (Bt*T, d_out)
    rows = [jnp.concatenate([ctx3[bi * H + h] for h in range(H)], axis=-1)
            for bi in range(Bt)]
    ctx = rows[0] if Bt == 1 else jnp.concatenate(rows, axis=0)

    # output projection (single matmul over all rows) + bias
    out = jnp.dot(cast(ctx), cast(wo_ref[...]),
                  preferred_element_type=f32) + bo_ref[...]
    o_ref[...] = out.reshape(Bt, T, d_out).astype(o_ref.dtype)


def multi_head_attention(x, wqkv_t, wo_t, bo, *, num_heads,
                         batch_block=None, mxu_dtype=None):
    """x: (B, T, d_in); wqkv_t: (d_in, 3*d_out) = [Wq^T | Wk^T | Wv^T];
    wo_t: (d_out, d_out) pre-transposed; bo: (d_out,)."""
    B, T, d_in = x.shape
    d_out = wqkv_t.shape[1] // 3
    assert d_out % num_heads == 0
    head_dim = d_out // num_heads

    if batch_block is None:
        # biggest block that still leaves >= 2 parallel grid steps (v7x has 2 TCs)
        batch_block = max(1, B // 2)
    assert B % batch_block == 0
    grid = (B // batch_block,)

    bo2 = bo.reshape(1, d_out)
    kernel = partial(_mha_kernel, num_heads=num_heads, head_dim=head_dim,
                     mxu_dtype=mxu_dtype)

    return pl.pallas_call(
        kernel,
        out_shape=jax.ShapeDtypeStruct((B, T, d_out), x.dtype),
        grid_spec=pltpu.PrefetchScalarGridSpec(
            num_scalar_prefetch=0,
            grid=grid,
            in_specs=[
                pl.BlockSpec((batch_block, T, d_in), lambda b: (b, 0, 0)),  # x
                pl.BlockSpec((d_in, 3 * d_out), lambda b: (0, 0)),          # W_qkv^T
                pl.BlockSpec((d_out, d_out), lambda b: (0, 0)),             # W_o^T
                pl.BlockSpec((1, d_out), lambda b: (0, 0)),                 # out bias
            ],
            out_specs=pl.BlockSpec((batch_block, T, d_out), lambda b: (b, 0, 0)),
        ),
        compiler_params=pltpu.CompilerParams(
            dimension_semantics=("parallel",)),
    )(x, wqkv_t, wo_t, bo2)


if __name__ == "__main__":
    # Module config: d_in=64, d_out=128, context_length=8, dropout=0.0,
    # num_heads=4 (head_dim=32), qkv_bias=False.
    # d_out=128 keeps the stored output block lane-dense (multiple of 128 lanes).
    B, T, d_in, d_out, num_heads = 2, 8, 64, 128, 4
    head_dim = d_out // num_heads

    key = jax.random.PRNGKey(0)
    kx, kq, kk, kv, ko, kb = jax.random.split(key, 6)

    x = jax.random.normal(kx, (B, T, d_in), dtype=jnp.float32)

    # nn.Linear stores weight as (out_features, in_features); forward is x @ W^T,
    # so we materialize the transposed (in, out) weights directly.
    s_in = 1.0 / math.sqrt(d_in)
    s_out = 1.0 / math.sqrt(d_out)
    wq_t = jax.random.uniform(kq, (d_in, d_out), jnp.float32, -s_in, s_in)
    wk_t = jax.random.uniform(kk, (d_in, d_out), jnp.float32, -s_in, s_in)
    wv_t = jax.random.uniform(kv, (d_in, d_out), jnp.float32, -s_in, s_in)
    wo_t = jax.random.uniform(ko, (d_out, d_out), jnp.float32, -s_out, s_out)
    bo = jax.random.uniform(kb, (d_out,), jnp.float32, -s_out, s_out)

    # fused QKV weight (wrapper-side layout plumbing, done once)
    wqkv_t = jnp.concatenate([wq_t, wk_t, wv_t], axis=1)   # (d_in, 3*d_out)

    out = multi_head_attention(x, wqkv_t, wo_t, bo, num_heads=num_heads)
    out = jax.block_until_ready(out)

    # Pure-JAX reference mirroring the PyTorch module's forward.
    def ref(x):
        q = (x @ wq_t).reshape(B, T, num_heads, head_dim).transpose(0, 2, 1, 3)
        k = (x @ wk_t).reshape(B, T, num_heads, head_dim).transpose(0, 2, 1, 3)
        v = (x @ wv_t).reshape(B, T, num_heads, head_dim).transpose(0, 2, 1, 3)
        s = jnp.einsum("bhqd,bhkd->bhqk", q, k)
        mask = jnp.triu(jnp.ones((T, T), bool), 1)
        s = jnp.where(mask, -jnp.inf, s) / math.sqrt(head_dim)
        w = jax.nn.softmax(s, axis=-1)
        c = jnp.einsum("bhqk,bhkd->bhqd", w, v).transpose(0, 2, 1, 3).reshape(B, T, d_out)
        return c @ wo_t + bo

    # 2e-3 tolerance accounts for the EUP approximate reciprocal
    # (pl.reciprocal(approx=True)); with approx=False the kernel matches to ~1e-5.
    assert jnp.allclose(out, ref(x), atol=2e-3, rtol=2e-3)
    print("KERNEL_OK")
</pallas_src>

<mosaic_0001>
module attributes {stable_mosaic.version = 11 : i64} {
  func.func @_mha_kernel(%arg0: i32, %arg1: memref<1x8x64xf32, #tpu.memory_space<vmem>>, %arg2: memref<64x384xf32, #tpu.memory_space<vmem>>, %arg3: memref<128x128xf32, #tpu.memory_space<vmem>>, %arg4: memref<1x128xf32, #tpu.memory_space<vmem>>, %arg5: memref<1x8x128xf32, #tpu.memory_space<vmem>>) attributes {dimension_semantics = [#tpu.dimension_semantics<parallel>], iteration_bounds = array<i64: 2>, scalar_prefetch = 0 : i64, scratch_operands = 0 : i64, tpu.core_type = #tpu.core_type<tc>, window_params = [{transform_indices = @transform_0, window_bounds = array<i64: 1, 8, 64>}, {pipeline_mode = #tpu.pipeline_mode<synchronous>, transform_indices = @transform_1, window_bounds = array<i64: 64, 384>}, {pipeline_mode = #tpu.pipeline_mode<synchronous>, transform_indices = @transform_2, window_bounds = array<i64: 128, 128>}, {pipeline_mode = #tpu.pipeline_mode<synchronous>, transform_indices = @transform_3, window_bounds = array<i64: 1, 128>}, {transform_indices = @transform_4, window_bounds = array<i64: 1, 8, 128>}]} {
    %c0 = arith.constant 0 : index
    %c0_0 = arith.constant 0 : index
    %c0_1 = arith.constant 0 : index
    %0 = vector.load %arg1[%c0, %c0_0, %c0_1] : memref<1x8x64xf32, #tpu.memory_space<vmem>>, vector<1x8x64xf32>
    %1 = vector.shape_cast %0 : vector<1x8x64xf32> to vector<8x64xf32>
    %c0_2 = arith.constant 0 : index
    %c0_3 = arith.constant 0 : index
    %2 = vector.load %arg2[%c0_2, %c0_3] : memref<64x384xf32, #tpu.memory_space<vmem>>, vector<64x384xf32>
    %cst = arith.constant dense<0.000000e+00> : vector<8x384xf32>
    %3 = tpu.matmul %1, %2, %cst {dimension_numbers = #tpu.dot_dimension_numbers<[1], [0], [0], [1], [0, 0, 1, 1], [], []>} : vector<8x64xf32>, vector<64x384xf32>, vector<8x384xf32> -> vector<8x384xf32>
    %4 = tpu.iota {dimensions = array<i32: 1>} : vector<1x8x8xi32>
    %5 = tpu.iota {dimensions = array<i32: 2>} : vector<1x8x8xi32>
    %6 = arith.cmpi sgt, %5, %4 : vector<1x8x8xi32>
    %7 = vector.extract_strided_slice %3 {offsets = [0, 0], sizes = [8, 32], strides = [1, 1]} : vector<8x384xf32> to vector<8x32xf32>
    %8 = vector.extract_strided_slice %3 {offsets = [0, 32], sizes = [8, 32], strides = [1, 1]} : vector<8x384xf32> to vector<8x32xf32>
    %9 = vector.extract_strided_slice %3 {offsets = [0, 64], sizes = [8, 32], strides = [1, 1]} : vector<8x384xf32> to vector<8x32xf32>
    %10 = vector.extract_strided_slice %3 {offsets = [0, 96], sizes = [8, 32], strides = [1, 1]} : vector<8x384xf32> to vector<8x32xf32>
    %11 = vector.shape_cast %7 : vector<8x32xf32> to vector<1x8x32xf32>
    %12 = vector.shape_cast %8 : vector<8x32xf32> to vector<1x8x32xf32>
    %13 = vector.shape_cast %9 : vector<8x32xf32> to vector<1x8x32xf32>
    %14 = vector.shape_cast %10 : vector<8x32xf32> to vector<1x8x32xf32>
    %15 = tpu.concatenate %11, %12, %13, %14 in 0 : vector<1x8x32xf32>, vector<1x8x32xf32>, vector<1x8x32xf32>, vector<1x8x32xf32> -> vector<4x8x32xf32>
    %cst_4 = arith.constant 0.176776692 : f32
    %16 = vector.broadcast %cst_4 : f32 to vector<4x8x32xf32>
    %17 = arith.mulf %15, %16 : vector<4x8x32xf32>
    %18 = vector.extract_strided_slice %3 {offsets = [0, 128], sizes = [8, 32], strides = [1, 1]} : vector<8x384xf32> to vector<8x32xf32>
    %19 = vector.extract_strided_slice %3 {offsets = [0, 160], sizes = [8, 32], strides = [1, 1]} : vector<8x384xf32> to vector<8x32xf32>
    %20 = vector.extract_strided_slice %3 {offsets = [0, 192], sizes = [8, 32], strides = [1, 1]} : vector<8x384xf32> to vector<8x32xf32>
    %21 = vector.extract_strided_slice %3 {offsets = [0, 224], sizes = [8, 32], strides = [1, 1]} : vector<8x384xf32> to vector<8x32xf32>
    %22 = vector.shape_cast %18 : vector<8x32xf32> to vector<1x8x32xf32>
    %23 = vector.shape_cast %19 : vector<8x32xf32> to vector<1x8x32xf32>
    %24 = vector.shape_cast %20 : vector<8x32xf32> to vector<1x8x32xf32>
    %25 = vector.shape_cast %21 : vector<8x32xf32> to vector<1x8x32xf32>
    %26 = tpu.concatenate %22, %23, %24, %25 in 0 : vector<1x8x32xf32>, vector<1x8x32xf32>, vector<1x8x32xf32>, vector<1x8x32xf32> -> vector<4x8x32xf32>
    %27 = vector.extract_strided_slice %3 {offsets = [0, 256], sizes = [8, 32], strides = [1, 1]} : vector<8x384xf32> to vector<8x32xf32>
    %28 = vector.extract_strided_slice %3 {offsets = [0, 288], sizes = [8, 32], strides = [1, 1]} : vector<8x384xf32> to vector<8x32xf32>
    %29 = vector.extract_strided_slice %3 {offsets = [0, 320], sizes = [8, 32], strides = [1, 1]} : vector<8x384xf32> to vector<8x32xf32>
    %30 = vector.extract_strided_slice %3 {offsets = [0, 352], sizes = [8, 32], strides = [1, 1]} : vector<8x384xf32> to vector<8x32xf32>
    %31 = vector.shape_cast %27 : vector<8x32xf32> to vector<1x8x32xf32>
    %32 = vector.shape_cast %28 : vector<8x32xf32> to vector<1x8x32xf32>
    %33 = vector.shape_cast %29 : vector<8x32xf32> to vector<1x8x32xf32>
    %34 = vector.shape_cast %30 : vector<8x32xf32> to vector<1x8x32xf32>
    %35 = tpu.concatenate %31, %32, %33, %34 in 0 : vector<1x8x32xf32>, vector<1x8x32xf32>, vector<1x8x32xf32>, vector<1x8x32xf32> -> vector<4x8x32xf32>
    "tpu.trace_start"() <{level = 10 : i32, message = "nqd,nkd->nqk"}> : () -> ()
    %cst_5 = arith.constant dense<0.000000e+00> : vector<4x8x8xf32>
    %36 = tpu.matmul %17, %26, %cst_5 {dimension_numbers = #tpu.dot_dimension_numbers<[2], [2], [1], [1], [0, 0, 0, 1, 1, 1], [0], [0]>} : vector<4x8x32xf32>, vector<4x8x32xf32>, vector<4x8x8xf32> -> vector<4x8x8xf32>
    %cst_6 = arith.constant -1.000000e+30 : f32
    "tpu.trace_stop"() : () -> ()
    %37 = vector.shape_cast %6 : vector<1x8x8xi1> to vector<1x8x8xi1>
    %38 = vector.broadcast %37 : vector<1x8x8xi1> to vector<4x8x8xi1>
    %39 = vector.broadcast %cst_6 : f32 to vector<4x8x8xf32>
    %40 = arith.select %38, %39, %36 : vector<4x8x8xi1>, vector<4x8x8xf32>
    %cst_7 = arith.constant dense<0xFF800000> : vector<4x8xf32>
    %41 = vector.multi_reduction <maximumf>, %40, %cst_7 [2] : vector<4x8x8xf32> to vector<4x8xf32>
    %42 = vector.shape_cast %41 : vector<4x8xf32> to vector<4x8x1xf32>
    %43 = vector.broadcast %42 : vector<4x8x1xf32> to vector<4x8x8xf32>
    %44 = arith.subf %40, %43 : vector<4x8x8xf32>
    %45 = math.exp %44 : vector<4x8x8xf32>
    %cst_8 = arith.constant dense<0.000000e+00> : vector<4x8xf32>
    %46 = vector.multi_reduction <add>, %45, %cst_8 [2] : vector<4x8x8xf32> to vector<4x8xf32>
    %47 = vector.shape_cast %46 : vector<4x8xf32> to vector<4x8x1xf32>
    "tpu.trace_start"() <{level = 10 : i32, message = "nqk,nkd->nqd"}> : () -> ()
    %cst_9 = arith.constant dense<0.000000e+00> : vector<4x8x32xf32>
    %48 = tpu.matmul %45, %35, %cst_9 {dimension_numbers = #tpu.dot_dimension_numbers<[2], [1], [1], [2], [0, 0, 0, 1, 1, 2], [0], [0]>} : vector<4x8x8xf32>, vector<4x8x32xf32>, vector<4x8x32xf32> -> vector<4x8x32xf32>
    "tpu.trace_stop"() : () -> ()
    %49 = tpu.reciprocal %47 {approx = true} : vector<4x8x1xf32> -> vector<4x8x1xf32>
    %50 = vector.broadcast %49 : vector<4x8x1xf32> to vector<4x8x32xf32>
    %51 = arith.mulf %48, %50 : vector<4x8x32xf32>
    %52 = vector.extract_strided_slice %51 {offsets = [0, 0, 0], sizes = [1, 8, 32], strides = [1, 1, 1]} : vector<4x8x32xf32> to vector<1x8x32xf32>
    %53 = vector.shape_cast %52 : vector<1x8x32xf32> to vector<8x32xf32>
    %54 = vector.extract_strided_slice %51 {offsets = [1, 0, 0], sizes = [1, 8, 32], strides = [1, 1, 1]} : vector<4x8x32xf32> to vector<1x8x32xf32>
    %55 = vector.shape_cast %54 : vector<1x8x32xf32> to vector<8x32xf32>
    %56 = vector.extract_strided_slice %51 {offsets = [2, 0, 0], sizes = [1, 8, 32], strides = [1, 1, 1]} : vector<4x8x32xf32> to vector<1x8x32xf32>
    %57 = vector.shape_cast %56 : vector<1x8x32xf32> to vector<8x32xf32>
    %58 = vector.extract_strided_slice %51 {offsets = [3, 0, 0], sizes = [1, 8, 32], strides = [1, 1, 1]} : vector<4x8x32xf32> to vector<1x8x32xf32>
    %59 = vector.shape_cast %58 : vector<1x8x32xf32> to vector<8x32xf32>
    %60 = tpu.concatenate %53, %55, %57, %59 in 1 : vector<8x32xf32>, vector<8x32xf32>, vector<8x32xf32>, vector<8x32xf32> -> vector<8x128xf32>
    %c0_10 = arith.constant 0 : index
    %c0_11 = arith.constant 0 : index
    %61 = vector.load %arg3[%c0_10, %c0_11] : memref<128x128xf32, #tpu.memory_space<vmem>>, vector<128x128xf32>
    %cst_12 = arith.constant dense<0.000000e+00> : vector<8x128xf32>
    %62 = tpu.matmul %60, %61, %cst_12 {dimension_numbers = #tpu.dot_dimension_numbers<[1], [0], [0], [1], [0, 0, 1, 1], [], []>} : vector<8x128xf32>, vector<128x128xf32>, vector<8x128xf32> -> vector<8x128xf32>
    %c0_13 = arith.constant 0 : index
    %c0_14 = arith.constant 0 : index
    %63 = vector.load %arg4[%c0_13, %c0_14] : memref<1x128xf32, #tpu.memory_space<vmem>>, vector<1x128xf32>
    %64 = vector.broadcast %63 : vector<1x128xf32> to vector<8x128xf32>
    %65 = arith.addf %62, %64 : vector<8x128xf32>
    %66 = vector.shape_cast %65 : vector<8x128xf32> to vector<1x8x128xf32>
    %c0_15 = arith.constant 0 : index
    %c0_16 = arith.constant 0 : index
    %c0_17 = arith.constant 0 : index
    %67 = vector.load %arg5[%c0_15, %c0_16, %c0_17] : memref<1x8x128xf32, #tpu.memory_space<vmem>>, vector<1x8x128xf32>
    tpu.vector_store %arg5[%c0_15, %c0_16, %c0_17], %66 {strides = array<i32>} : memref<1x8x128xf32, #tpu.memory_space<vmem>>, vector<1x8x128xf32>,
    return
  }
  func.func @transform_0(%arg0: i32) -> (i32, i32, i32) {
    %c0_i32 = arith.constant 0 : i32
    %c0_i32_0 = arith.constant 0 : i32
    %c0_i32_1 = arith.constant 0 : i32
    return %arg0, %c0_i32, %c0_i32_0 : i32, i32, i32
  }
  func.func @transform_1(%arg0: i32) -> (i32, i32) {
    %c0_i32 = arith.constant 0 : i32
    %c0_i32_0 = arith.constant 0 : i32
    %c0_i32_1 = arith.constant 0 : i32
    return %c0_i32, %c0_i32_0 : i32, i32
  }
  func.func @transform_2(%arg0: i32) -> (i32, i32) {
    %c0_i32 = arith.constant 0 : i32
    %c0_i32_0 = arith.constant 0 : i32
    %c0_i32_1 = arith.constant 0 : i32
    return %c0_i32, %c0_i32_0 : i32, i32
  }
  func.func @transform_3(%arg0: i32) -> (i32, i32) {
    %c0_i32 = arith.constant 0 : i32
    %c0_i32_0 = arith.constant 0 : i32
    %c0_i32_1 = arith.constant 0 : i32
    return %c0_i32, %c0_i32_0 : i32, i32
  }
  func.func @transform_4(%arg0: i32) -> (i32, i32, i32) {
    %c0_i32 = arith.constant 0 : i32
    %c0_i32_0 = arith.constant 0 : i32
    %c0_i32_1 = arith.constant 0 : i32
    return %arg0, %c0_i32, %c0_i32_0 : i32, i32, i32
  }
}

</mosaic_0001>

<llo_original>
// kernel: tpu_custom_call.1
$region0: #{tpu_custom_call.1}
  #allocation0 [shape = 'u32[]', space=smem, size = 0x4, offset = 0x4, fixed_abs, tag = 'smem constant byte address 0x4 - core index']
  #allocation1 [shape = 'u32[144,128]{1,0:T(1,128)}', space=vmem, size = 0x12000, scoped, tag = 'internal scratch']
  %s0 = inlined_call_operand.hbm [shape: f32[2,8,64], index: 0, kind: input, shape index: {}]
  %s1 = inlined_call_operand.hbm [shape: f32[64,384], index: 1, kind: input, shape index: {}]
  %s2 = inlined_call_operand.hbm [shape: f32[128,128], index: 2, kind: input, shape index: {}]
  %s3 = inlined_call_operand.vmem [shape: f32[1,128], index: 3, kind: input, shape index: {}]
  %s4 = inlined_call_operand.hbm [shape: f32[2,8,128], index: 4, kind: output, shape index: {}]
  %s5 = sld [smem:[#allocation0]]
  $region61: #{tpu_custom_call.1} parent=0
    _
  %s7 = ssub.s32 1, %s5
  %s8 = scalar_select 0, %s7, %s5
  $region1: #{tpu_custom_call.1} parent=0
    #allocation2 [shape = 'u8[8192]{0}', space=vmem, size = 0x2000, scoped, tag = 'input window, operand 0']
    #allocation3 [shape = 's32[2]{0}', space=sflag, size = 0x8, scoped, tag = 'scoped memory for tpu_custom_call.1']
    #allocation4 [shape = 's32[2]{0}', space=sflag, size = 0x8, scoped, tag = 'scoped memory for tpu_custom_call.1']
    #allocation5 [shape = 'u8[98304]{0}', space=vmem, size = 0x18000, scoped, tag = 'input window, operand 1, single buffered']
    #allocation6 [shape = 's32[1]{0}', space=sflag, size = 0x4, scoped, tag = 'scoped memory for tpu_custom_call.1']
    #allocation7 [shape = 'u8[65536]{0}', space=vmem, size = 0x10000, scoped, tag = 'input window, operand 2, single buffered']
    #allocation8 [shape = 'u8[8192]{0}', space=vmem, size = 0x2000, scoped, tag = 'output window, operand 0']
    %9 = vsyncpa [#allocation3], 0
    %s10 = scalar_lea.sflag [#allocation3], 1
    %11 = vsyncpa %s10, 0
    %12 = vsyncpa [#allocation6], 0
    %13 = vsyncpa [#allocation4], 0
    %s14 = scalar_lea.sflag [#allocation4], 1
    %15 = vsyncpa %s14, 0
    loop: start=0, step=1, limit=4
    $region2: #{tpu_custom_call.1} parent=1 // loop_pre_header
      _
    $region3: #{tpu_custom_call.1} parent=1 // loop_header
      %s17 = sphi 0, %s21
      %p18 = scmp.ge.s32.totalorder %s17, 4
      %s27 = sphi 0, %s29
      %s30 = sphi 0, %s27
      %s31 = sphi 0, %s30
      %s47 = sphi 0, %s31
      %s51 = sphi 0, %s51
      %s53 = sphi 0, %s51
      %s54 = sphi 0, %s53
      %s68 = sphi 0, %s54
      %s72 = sphi 0, %s72
      %s74 = sphi 0, %s72
      %s75 = sphi 0, %s74
      %s89 = sphi 0, %s75
      %s93 = sphi 0, %s93
      %s95 = sphi 0, %s93
      %s96 = sphi 0, %s95
      %s110 = sphi 0, %s96
      %s116 = sphi 0, %s118
      %s119 = sphi 0, %s116
      %s120 = sphi 0, %s119
      %s136 = sphi 0, %s120
    $region4: #{tpu_custom_call.1} parent=1 // loop_header_branch
      %20 = sbr.rel (%p18) target = $region8
    $region5: #{tpu_custom_call.1} parent=1 // loop_body
      %s22 = ssub.s32 %s17, 1
      %s23 = ssub.s32 %s17, 2
      %s24 = sadd.s32 %s17, 1
      %s25 = ssub.s32 %s17, %s24
      %p26 = scmp.eq.s32.totalorder %s25, 0
      %s28 = sadd.s32 %s27, 1
      %s29 = scalar_select %p26, %s27, %s28
      %p32 = pneg %p26
      %p33 = scmp.eq.s32.totalorder %s17, 1
      %p34 = por %p32, %p33
      %p35 = scmp.ne.s32.totalorder %s27, %s30
      %p36 = scmp.eq.s32.totalorder %s17, 0
      %p37 = por %p35, %p36
      %p38 = scmp.ne.s32.totalorder %s27, %s30
      %p39 = scmp.eq.s32.totalorder %s22, 1
      %p40 = por %p38, %p39
      %p41 = scmp.ne.s32.totalorder %s30, %s31
      %p42 = scmp.eq.s32.totalorder %s22, 0
      %p43 = por %p41, %p42
      %p44 = scmp.ne.s32.totalorder %s30, %s31
      %p45 = scmp.eq.s32.totalorder %s23, 1
      %p46 = por %p44, %p45
      %p48 = scmp.ne.s32.totalorder %s31, %s47
      %p49 = scmp.eq.s32.totalorder %s23, 0
      %p50 = por %p48, %p49
      %s52 = sadd.s32 %s51, 1
      %p55 = scmp.eq.s32.totalorder %s17, 1
      %p56 = scmp.ne.s32.totalorder %s51, %s53
      %p57 = scmp.eq.s32.totalorder %s17, 0
      %p58 = por %p56, %p57
      %p59 = scmp.ne.s32.totalorder %s51, %s53
      %p60 = scmp.eq.s32.totalorder %s22, 1
      %p61 = por %p59, %p60
      %p62 = scmp.ne.s32.totalorder %s53, %s54
      %p63 = scmp.eq.s32.totalorder %s22, 0
      %p64 = por %p62, %p63
      %p65 = scmp.ne.s32.totalorder %s53, %s54
      %p66 = scmp.eq.s32.totalorder %s23, 1
      %p67 = por %p65, %p66
      %p69 = scmp.ne.s32.totalorder %s54, %s68
      %p70 = scmp.eq.s32.totalorder %s23, 0
      %p71 = por %p69, %p70
      %s73 = sadd.s32 %s72, 1
      %p76 = scmp.eq.s32.totalorder %s17, 1
      %p77 = scmp.ne.s32.totalorder %s72, %s74
      %p78 = scmp.eq.s32.totalorder %s17, 0
      %p79 = por %p77, %p78
      %p80 = scmp.ne.s32.totalorder %s72, %s74
      %p81 = scmp.eq.s32.totalorder %s22, 1
      %p82 = por %p80, %p81
      %p83 = scmp.ne.s32.totalorder %s74, %s75
      %p84 = scmp.eq.s32.totalorder %s22, 0
      %p85 = por %p83, %p84
      %p86 = scmp.ne.s32.totalorder %s74, %s75
      %p87 = scmp.eq.s32.totalorder %s23, 1
      %p88 = por %p86, %p87
      %p90 = scmp.ne.s32.totalorder %s75, %s89
      %p91 = scmp.eq.s32.totalorder %s23, 0
      %p92 = por %p90, %p91
      %s94 = sadd.s32 %s93, 1
      %p97 = scmp.eq.s32.totalorder %s17, 1
      %p98 = scmp.ne.s32.totalorder %s93, %s95
      %p99 = scmp.eq.s32.totalorder %s17, 0
      %p100 = por %p98, %p99
      %p101 = scmp.ne.s32.totalorder %s93, %s95
      %p102 = scmp.eq.s32.totalorder %s22, 1
      %p103 = por %p101, %p102
      %p104 = scmp.ne.s32.totalorder %s95, %s96
      %p105 = scmp.eq.s32.totalorder %s22, 0
      %p106 = por %p104, %p105
      %p107 = scmp.ne.s32.totalorder %s95, %s96
      %p108 = scmp.eq.s32.totalorder %s23, 1
      %p109 = por %p107, %p108
      %p111 = scmp.ne.s32.totalorder %s96, %s110
      %p112 = scmp.eq.s32.totalorder %s23, 0
      %p113 = por %p111, %p112
      %s114 = ssub.s32 %s17, %s24
      %p115 = scmp.eq.s32.totalorder %s114, 0
      %s117 = sadd.s32 %s116, 1
      %s118 = scalar_select %p115, %s116, %s117
      %p121 = pneg %p115
      %p122 = scmp.eq.s32.totalorder %s17, 1
      %p123 = por %p121, %p122
      %p124 = scmp.ne.s32.totalorder %s116, %s119
      %p125 = scmp.eq.s32.totalorder %s17, 0
      %p126 = por %p124, %p125
      %p127 = scmp.ne.s32.totalorder %s116, %s119
      %p128 = scmp.eq.s32.totalorder %s22, 1
      %p129 = por %p127, %p128
      %p130 = scmp.ne.s32.totalorder %s119, %s120
      %p131 = scmp.eq.s32.totalorder %s22, 0
      %p132 = por %p130, %p131
      %p133 = scmp.ne.s32.totalorder %s119, %s120
      %p134 = scmp.eq.s32.totalorder %s23, 1
      %p135 = por %p133, %p134
      %p137 = scmp.ne.s32.totalorder %s120, %s136
      %p138 = scmp.eq.s32.totalorder %s23, 0
      %p139 = por %p137, %p138
      %p140 = scmp.le.s32.totalorder 1, %s17
      %p141 = scmp.lt.s32.totalorder %s17, 3
      %p142 = pnand %p140, %p141
      %p143 = pneg %p142
      // Predicated region
      $region9: #{tpu_custom_call.1} parent=5 // pred_check
        _
      $region10: #{tpu_custom_call.1} parent=5 // pred_check_branch
        %145 = sbr.rel (%p142) target = $region12
      $region11: #{tpu_custom_call.1} parent=5 // pred_region
        %s146 = ssub.s32 %s17, 1
        // Predicated region
        $region13: #{tpu_custom_call.1} parent=11 // pred_check
          %p147 = pneg %p64
        $region14: #{tpu_custom_call.1} parent=11 // pred_check_branch
          %149 = sbr.rel (%p147) target = $region16
        $region15: #{tpu_custom_call.1} parent=11 // pred_region
          %s151 = ssub.s32 3072, 3072
          %152 = vsyncadd [#allocation6], %s151
          %s153 = sshll.u32 [#allocation5], 4
          %s154 = int_to_ptr.vmem [resolvable:$true] %s153
          %159 = dma.hbm_to_vmem [thread:$0]  %s1, 3072, %s154, [#allocation6], 384, 384, 24
        $region16: #{tpu_custom_call.1} parent=11 // pred_fallthru
          _
        // Predicated region
        $region17: #{tpu_custom_call.1} parent=11 // pred_check
          %p160 = pneg %p85
        $region18: #{tpu_custom_call.1} parent=11 // pred_check_branch
          %162 = sbr.rel (%p160) target = $region20
        $region19: #{tpu_custom_call.1} parent=11 // pred_region
          %s164 = ssub.s32 2048, 2048
          %165 = vsyncadd [#allocation6], %s164
          %s166 = sshll.u32 [#allocation7], 4
          %s167 = int_to_ptr.vmem [resolvable:$true] %s166
          %172 = dma.hbm_to_vmem [thread:$0]  %s2, 2048, %s167, [#allocation6], 128, 128, 8
        $region20: #{tpu_custom_call.1} parent=11 // pred_fallthru
          _
        // Predicated region
        $region21: #{tpu_custom_call.1} parent=11 // pred_check
          %p173 = pneg %p106
        $region22: #{tpu_custom_call.1} parent=11 // pred_check_branch
          %175 = sbr.rel (%p173) target = $region24
        $region23: #{tpu_custom_call.1} parent=11 // pred_region
          _
        $region24: #{tpu_custom_call.1} parent=11 // pred_fallthru
          _
      $region12: #{tpu_custom_call.1} parent=5 // pred_fallthru
        _
      %p176 = scmp.lt.s32.totalorder %s17, 2
      // Predicated region
      $region25: #{tpu_custom_call.1} parent=5 // pred_check
        %p177 = pneg %p176
      $region26: #{tpu_custom_call.1} parent=5 // pred_check_branch
        %179 = sbr.rel (%p177) target = $region28
      $region27: #{tpu_custom_call.1} parent=5 // pred_region
        // Predicated region
        $region29: #{tpu_custom_call.1} parent=27 // pred_check
          %p180 = pneg %p37
        $region30: #{tpu_custom_call.1} parent=27 // pred_check_branch
          %182 = sbr.rel (%p180) target = $region32
        $region31: #{tpu_custom_call.1} parent=27 // pred_region
          %s183 = sand.u32 %s27, 1
          %s184 = scalar_lea.sflag [#allocation3], %s183
          %s185 = sand.u32 %s27, 1
          %s186 = smul.addr %s185, 8
          %s187 = scalar_lea.vmem [#allocation2], %s186
          %s189 = ssub.s32 128, 128
          %190 = vsyncadd %s184, %s189
          %s191 = smul.addr %s17, 128
          %s192 = scalar_lea.hbm %s0, %s191
          %s194 = sshll.u32 %s187, 4
          %s195 = int_to_ptr.vmem [resolvable:$true] %s194
          %197 = dma.hbm_to_vmem [thread:$0]  %s192, 128, %s195, %s184
        $region32: #{tpu_custom_call.1} parent=27 // pred_fallthru
          _
      $region28: #{tpu_custom_call.1} parent=5 // pred_fallthru
        _
      %p198 = scmp.le.s32.totalorder 1, %s17
      %p199 = scmp.lt.s32.totalorder %s17, 3
      %p200 = pnand %p198, %p199
      %p201 = pneg %p200
      // Predicated region
      $region33: #{tpu_custom_call.1} parent=5 // pred_check
        _
      $region34: #{tpu_custom_call.1} parent=5 // pred_check_branch
        %203 = sbr.rel (%p200) target = $region36
      $region35: #{tpu_custom_call.1} parent=5 // pred_region
        %s204 = ssub.s32 %s17, 1
        %s205 = sand.u32 %s30, 1
        %s206 = scalar_lea.sflag [#allocation3], %s205
        %s207 = sand.u32 %s30, 1
        %s208 = smul.addr %s207, 8
        %s209 = scalar_lea.vmem [#allocation2], %s208
        // Predicated region
        $region37: #{tpu_custom_call.1} parent=35 // pred_check
          %p210 = pneg %p43
        $region38: #{tpu_custom_call.1} parent=35 // pred_check_branch
          %212 = sbr.rel (%p210) target = $region40
        $region39: #{tpu_custom_call.1} parent=35 // pred_region
          %213 = dma.done %s206, 128
        $region40: #{tpu_custom_call.1} parent=35 // pred_fallthru
          _
        // Predicated region
        $region41: #{tpu_custom_call.1} parent=35 // pred_check
          %p214 = pneg %p64
        $region42: #{tpu_custom_call.1} parent=35 // pred_check_branch
          %216 = sbr.rel (%p214) target = $region44
        $region43: #{tpu_custom_call.1} parent=35 // pred_region
          %217 = dma.done [#allocation6], 3072
        $region44: #{tpu_custom_call.1} parent=35 // pred_fallthru
          _
        // Predicated region
        $region45: #{tpu_custom_call.1} parent=35 // pred_check
          %p218 = pneg %p85
        $region46: #{tpu_custom_call.1} parent=35 // pred_check_branch
          %220 = sbr.rel (%p218) target = $region48
        $region47: #{tpu_custom_call.1} parent=35 // pred_region
          %221 = dma.done [#allocation6], 2048
        $region48: #{tpu_custom_call.1} parent=35 // pred_fallthru
          _
        %s222 = sand.u32 %s30, 1
        %s223 = scalar_lea.sflag [#allocation3], %s222
        %s224 = sand.u32 %s30, 1
        %s225 = smul.addr %s224, 8
        %s226 = scalar_lea.vmem [#allocation2], %s225
        %p227 = pneg %p43
        %p228 = pneg %p40
        %p229 = pneg %p64
        %p230 = pneg %p61
        %p231 = pneg %p85
        %p232 = pneg %p82
        %p233 = pneg %p106
        %p234 = pneg %p103
        %p235 = pneg %p132
        %p236 = pneg %p129
        %s237 = sand.u32 %s119, 1
        %s238 = scalar_lea.sflag [#allocation4], %s237
        %s239 = sand.u32 %s119, 1
        %s240 = smul.addr %s239, 8
        %s241 = scalar_lea.vmem [#allocation8], %s240
        %v242 = vld [vmem:[%s209] sm:$0xff]
        %v243 = vld [vmem:[#allocation5] sm:$0xff]
        %v244 = vld [vmem:[#allocation5 + $0x8] sm:$0xff]
        %v245 = vld [vmem:[#allocation5 + $0x10] sm:$0xff]
        %v246 = vld [vmem:[#allocation5 + $0x18] sm:$0xff]
        %v247 = vld [vmem:[#allocation5 + $0x20] sm:$0xff]
        %v248 = vld [vmem:[#allocation5 + $0x28] sm:$0xff]
        %v249 = vld [vmem:[#allocation5 + $0x30] sm:$0xff]
        %v250 = vld [vmem:[#allocation5 + $0x38] sm:$0xff]
        %v251 = vld [vmem:[#allocation5 + $0x40] sm:$0xff]
        %v252 = vld [vmem:[#allocation5 + $0x48] sm:$0xff]
        %v253 = vld [vmem:[#allocation5 + $0x50] sm:$0xff]
        %v254 = vld [vmem:[#allocation5 + $0x58] sm:$0xff]
        %v255 = vld [vmem:[#allocation5 + $0x60] sm:$0xff]
        %v256 = vld [vmem:[#allocation5 + $0x68] sm:$0xff]
        %v257 = vld [vmem:[#allocation5 + $0x70] sm:$0xff]
        %v258 = vld [vmem:[#allocation5 + $0x78] sm:$0xff]
        %v259 = vld [vmem:[#allocation5 + $0x80] sm:$0xff]
        %v260 = vld [vmem:[#allocation5 + $0x88] sm:$0xff]
        %v261 = vld [vmem:[#allocation5 + $0x90] sm:$0xff]
        %v262 = vld [vmem:[#allocation5 + $0x98] sm:$0xff]
        %v263 = vld [vmem:[#allocation5 + $0xa0] sm:$0xff]
        %v264 = vld [vmem:[#allocation5 + $0xa8] sm:$0xff]
        %v265 = vld [vmem:[#allocation5 + $0xb0] sm:$0xff]
        %v266 = vld [vmem:[#allocation5 + $0xb8] sm:$0xff]
        %vm267 = vcmask 523264
        %v269 = vsel %vm267, %v242, 0
        %271 = vmatprep.subr.mxu0 %v244
        %272 = vmatpush1.msra.mxu0 %v243
        %273 = vmatprep.subr.mxu0 %v247
        %274 = vmatpush1.msra.mxu0 %v246
        %275 = vmatprep.subr.mxu0 %v250
        %276 = vmatpush1.msra.mxu0 %v249
        %277 = vmatprep.subr.mxu0 %v253
        %278 = vmatpush1.msra.mxu0 %v252
        %279 = vmatprep.subr.mxu0 %v256
        %280 = vmatpush1.msra.mxu0 %v255
        %281 = vmatprep.subr.mxu0 %v259
        %282 = vmatpush1.msra.mxu0 %v258
        %283 = vmatprep.subr.mxu0 %v262
        %284 = vmatpush1.msra.mxu0 %v261
        %285 = vmatprep.subr.mxu0 %v265
        %286 = vmatpush1.msra.mxu0 %v264
        %287 = vmatprep.subr.mxu0 0.0
        %288 = vmatpush1.msra.mxu0 0.0
        %289 = vmatprep.subr.mxu0 0.0
        %290 = vmatpush1.msra.mxu0 0.0
        %291 = vmatprep.subr.mxu0 0.0
        %292 = vmatpush1.msra.mxu0 0.0
        %293 = vmatprep.subr.mxu0 0.0
        %294 = vmatpush1.msra.mxu0 0.0
        %295 = vmatprep.subr.mxu0 0.0
        %296 = vmatpush1.msra.mxu0 0.0
        %297 = vmatprep.subr.mxu0 0.0
        %298 = vmatpush1.msra.mxu0 0.0
        %299 = vmatprep.subr.mxu0 0.0
        %300 = vmatpush1.msra.mxu0 0.0
        %301 = vmatprep.subr.mxu0 0.0
        %302 = vmatpush1.msra.mxu0 0.0
        %303 = vmatprep.subr.mxu0 0.0
        %304 = vmatpush1.msra.mxu0 0.0
        %305 = vmatprep.subr.mxu0 0.0
        %306 = vmatpush1.msra.mxu0 0.0
        %307 = vmatprep.subr.mxu0 0.0
        %308 = vmatpush1.msra.mxu0 0.0
        %309 = vmatprep.subr.mxu0 0.0
        %310 = vmatpush1.msra.mxu0 0.0
        %311 = vmatprep.subr.mxu0 0.0
        %312 = vmatpush1.msra.mxu0 0.0
        %313 = vmatprep.subr.mxu0 0.0
        %314 = vmatpush1.msra.mxu0 0.0
        %315 = vmatprep.subr.mxu0 0.0
        %316 = vmatpush1.msra.mxu0 0.0
        %317 = vmatprep.subr.mxu0 0.0
        %318 = vmatpush1.msra.mxu0 0.0
        %319 = vmatprep.subr.mxu0 0.0
        %320 = vmatpush1.msra.mxu0 0.0
        %321 = vmatprep.subr.mxu0 0.0
        %322 = vmatpush1.msra.mxu0 0.0
        %323 = vmatprep.subr.mxu0 0.0
        %324 = vmatpush1.msra.mxu0 0.0
        %325 = vmatprep.subr.mxu0 0.0
        %326 = vmatpush1.msra.mxu0 0.0
        %327 = vmatprep.subr.mxu0 0.0
        %328 = vmatpush1.msra.mxu0 0.0
        %329 = vmatprep.subr.mxu0 0.0
        %330 = vmatpush1.msra.mxu0 0.0
        %331 = vmatprep.subr.mxu0 0.0
        %332 = vmatpush1.msra.mxu0 0.0
        %333 = vmatprep.subr.mxu0 0.0
        %334 = vmatpush1.msra.mxu0 0.0
        %335 = vmatprep.mubr.f32.mxu0 0.0
        %336 = vmatmul.mubr.f32.gmra.mrb[0].mxu0 %v269
        %v337 = vpop.f32.mrb[0].mxu0
        %v338 = vadd.f32 0.0, %v337
        %v339 = vpop.f32.mrb[0].mxu0
        %v340 = vadd.f32 0.0, %v339
        %341 = vdwg.mxu0
        %342 = vmatprep.subr.mxu0 0.0
        %343 = vmatpush1.msra.mxu0 %v245
        %344 = vmatprep.subr.mxu0 0.0
        %345 = vmatpush1.msra.mxu0 %v248
        %346 = vmatprep.subr.mxu0 0.0
        %347 = vmatpush1.msra.mxu0 %v251
        %348 = vmatprep.subr.mxu0 0.0
        %349 = vmatpush1.msra.mxu0 %v254
        %350 = vmatprep.subr.mxu0 0.0
        %351 = vmatpush1.msra.mxu0 %v257
        %352 = vmatprep.subr.mxu0 0.0
        %353 = vmatpush1.msra.mxu0 %v260
        %354 = vmatprep.subr.mxu0 0.0
        %355 = vmatpush1.msra.mxu0 %v263
        %356 = vmatprep.subr.mxu0 0.0
        %357 = vmatpush1.msra.mxu0 %v266
        %358 = vmatprep.subr.mxu0 0.0
        %359 = vmatpush1.msra.mxu0 0.0
        %360 = vmatprep.subr.mxu0 0.0
        %361 = vmatpush1.msra.mxu0 0.0
        %362 = vmatprep.subr.mxu0 0.0
        %363 = vmatpush1.msra.mxu0 0.0
        %364 = vmatprep.subr.mxu0 0.0
        %365 = vmatpush1.msra.mxu0 0.0
        %366 = vmatprep.subr.mxu0 0.0
        %367 = vmatpush1.msra.mxu0 0.0
        %368 = vmatprep.subr.mxu0 0.0
        %369 = vmatpush1.msra.mxu0 0.0
        %370 = vmatprep.subr.mxu0 0.0
        %371 = vmatpush1.msra.mxu0 0.0
        %372 = vmatprep.subr.mxu0 0.0
        %373 = vmatpush1.msra.mxu0 0.0
        %374 = vmatprep.subr.mxu0 0.0
        %375 = vmatpush1.msra.mxu0 0.0
        %376 = vmatprep.subr.mxu0 0.0
        %377 = vmatpush1.msra.mxu0 0.0
        %378 = vmatprep.subr.mxu0 0.0
        %379 = vmatpush1.msra.mxu0 0.0
        %380 = vmatprep.subr.mxu0 0.0
        %381 = vmatpush1.msra.mxu0 0.0
        %382 = vmatprep.subr.mxu0 0.0
        %383 = vmatpush1.msra.mxu0 0.0
        %384 = vmatprep.subr.mxu0 0.0
        %385 = vmatpush1.msra.mxu0 0.0
        %386 = vmatprep.subr.mxu0 0.0
        %387 = vmatpush1.msra.mxu0 0.0
        %388 = vmatprep.subr.mxu0 0.0
        %389 = vmatpush1.msra.mxu0 0.0
        %390 = vmatprep.subr.mxu0 0.0
        %391 = vmatpush1.msra.mxu0 0.0
        %392 = vmatprep.subr.mxu0 0.0
        %393 = vmatpush1.msra.mxu0 0.0
        %394 = vmatprep.subr.mxu0 0.0
        %395 = vmatpush1.msra.mxu0 0.0
        %396 = vmatprep.subr.mxu0 0.0
        %397 = vmatpush1.msra.mxu0 0.0
        %398 = vmatprep.subr.mxu0 0.0
        %399 = vmatpush1.msra.mxu0 0.0
        %400 = vmatprep.subr.mxu0 0.0
        %401 = vmatpush1.msra.mxu0 0.0
        %402 = vmatprep.subr.mxu0 0.0
        %403 = vmatpush1.msra.mxu0 0.0
        %404 = vmatprep.subr.mxu0 0.0
        %405 = vmatpush1.msra.mxu0 0.0
        %406 = vmatprep.mubr.f32.mxu0 0.0
        %407 = vmatmul.mubr.f32.gmra.mrb[0].mxu0 %v269
        %v408 = vpop.f32.mrb[0].mxu0
        %v409 = vadd.f32 0.0, %v408
        %v410 = vpop.f32.mrb[0].mxu0
        %411 = vdwg.mxu0
        %v412 = vlaneseq
        %v413 = vshrl.u32 %v412, 7
        %v414 = vlaneseq
        %v415 = vand.u32 %v414, 127
        %vm416 = vcmp.gt.s32.totalorder %v415, %v413
        %418 = vrot.lane.b32.xlu0 %v338, 96
        %v419 = vpop.permute.xlu0 %418
        %421 = vrot.lane.b32.xlu0 %v338, 64
        %v422 = vpop.permute.xlu0 %421
        %424 = vrot.lane.b32.xlu0 %v338, 32
        %v425 = vpop.permute.xlu0 %424
        %v427 = vmul.f32 %v338, 0.17677669
        %v428 = vmul.f32 %v419, 0.17677669
        %v429 = vmul.f32 %v422, 0.17677669
        %v430 = vmul.f32 %v425, 0.17677669
        %432 = vrot.lane.b32.xlu0 %v340, 96
        %v433 = vpop.permute.xlu0 %432
        %434 = vrot.lane.b32.xlu0 %v340, 64
        %v435 = vpop.permute.xlu0 %434
        %436 = vrot.lane.b32.xlu0 %v340, 32
        %v437 = vpop.permute.xlu0 %436
        %439 = vrot.lane.b32.xlu0 %v409, 96
        %v440 = vpop.permute.xlu0 %439
        %442 = vrot.lane.b32.xlu0 %v409, 64
        %v443 = vpop.permute.xlu0 %442
        %445 = vrot.lane.b32.xlu0 %v409, 32
        %v446 = vpop.permute.xlu0 %445
        %vm448 = vcmask 261120
        %v450 = vsel %vm448, %v427, 0
        %v452 = vsel %vm448, %v340, 0
        %454 = vmatprep.subr.mxu0 0.0
        %455 = vmatpush1.xpose.msra.mxu0 %v452
        %456 = vmatprep.subr.mxu0 0.0
        %457 = vmatpush1.xpose.msra.mxu0 0.0
        %458 = vmatprep.subr.mxu0 0.0
        %459 = vmatpush1.xpose.msra.mxu0 0.0
        %460 = vmatprep.subr.mxu0 0.0
        %461 = vmatpush1.xpose.msra.mxu0 0.0
        %462 = vmatprep.subr.mxu0 0.0
        %463 = vmatpush1.xpose.msra.mxu0 0.0
        %464 = vmatprep.subr.mxu0 0.0
        %465 = vmatpush1.xpose.msra.mxu0 0.0
        %466 = vmatprep.subr.mxu0 0.0
        %467 = vmatpush1.xpose.msra.mxu0 0.0
        %468 = vmatprep.subr.mxu0 0.0
        %469 = vmatpush1.xpose.msra.mxu0 0.0
        %470 = vmatprep.subr.mxu0 0.0
        %471 = vmatpush1.xpose.msra.mxu0 0.0
        %472 = vmatprep.subr.mxu0 0.0
        %473 = vmatpush1.xpose.msra.mxu0 0.0
        %474 = vmatprep.subr.mxu0 0.0
        %475 = vmatpush1.xpose.msra.mxu0 0.0
        %476 = vmatprep.subr.mxu0 0.0
        %477 = vmatpush1.xpose.msra.mxu0 0.0
        %478 = vmatprep.subr.mxu0 0.0
        %479 = vmatpush1.xpose.msra.mxu0 0.0
        %480 = vmatprep.subr.mxu0 0.0
        %481 = vmatpush1.xpose.msra.mxu0 0.0
        %482 = vmatprep.subr.mxu0 0.0
        %483 = vmatpush1.xpose.msra.mxu0 0.0
        %484 = vmatprep.subr.mxu0 0.0
        %485 = vmatpush1.xpose.msra.mxu0 0.0
        %486 = vmatprep.subr.mxu0 0.0
        %487 = vmatpush1.xpose.msra.mxu0 0.0
        %488 = vmatprep.subr.mxu0 0.0
        %489 = vmatpush1.xpose.msra.mxu0 0.0
        %490 = vmatprep.subr.mxu0 0.0
        %491 = vmatpush1.xpose.msra.mxu0 0.0
        %492 = vmatprep.subr.mxu0 0.0
        %493 = vmatpush1.xpose.msra.mxu0 0.0
        %494 = vmatprep.subr.mxu0 0.0
        %495 = vmatpush1.xpose.msra.mxu0 0.0
        %496 = vmatprep.subr.mxu0 0.0
        %497 = vmatpush1.xpose.msra.mxu0 0.0
        %498 = vmatprep.subr.mxu0 0.0
        %499 = vmatpush1.xpose.msra.mxu0 0.0
        %500 = vmatprep.subr.mxu0 0.0
        %501 = vmatpush1.xpose.msra.mxu0 0.0
        %502 = vmatprep.subr.mxu0 0.0
        %503 = vmatpush1.xpose.msra.mxu0 0.0
        %504 = vmatprep.subr.mxu0 0.0
        %505 = vmatpush1.xpose.msra.mxu0 0.0
        %506 = vmatprep.subr.mxu0 0.0
        %507 = vmatpush1.xpose.msra.mxu0 0.0
        %508 = vmatprep.subr.mxu0 0.0
        %509 = vmatpush1.xpose.msra.mxu0 0.0
        %510 = vmatprep.subr.mxu0 0.0
        %511 = vmatpush1.xpose.msra.mxu0 0.0
        %512 = vmatprep.subr.mxu0 0.0
        %513 = vmatpush1.xpose.msra.mxu0 0.0
        %514 = vmatprep.subr.mxu0 0.0
        %515 = vmatpush1.xpose.msra.mxu0 0.0
        %516 = vmatprep.subr.mxu0 0.0
        %517 = vmatpush1.xpose.msra.mxu0 0.0
        %518 = vmatprep.mubr.f32.mxu0 0.0
        %519 = vmatmul.mubr.f32.gmra.mrb[0].mxu0 %v450
        %v520 = vpop.f32.mrb[0].mxu0
        %v521 = vadd.f32 0.0, %v520
        %v522 = vpop.f32.mrb[0].mxu0
        %523 = vdwg.mxu0
        %v525 = vsel %vm448, %v428, 0
        %v527 = vsel %vm448, %v433, 0
        %529 = vmatprep.subr.mxu0 0.0
        %530 = vmatpush1.xpose.msra.mxu0 %v527
        %531 = vmatprep.subr.mxu0 0.0
        %532 = vmatpush1.xpose.msra.mxu0 0.0
        %533 = vmatprep.subr.mxu0 0.0
        %534 = vmatpush1.xpose.msra.mxu0 0.0
        %535 = vmatprep.subr.mxu0 0.0
        %536 = vmatpush1.xpose.msra.mxu0 0.0
        %537 = vmatprep.subr.mxu0 0.0
        %538 = vmatpush1.xpose.msra.mxu0 0.0
        %539 = vmatprep.subr.mxu0 0.0
        %540 = vmatpush1.xpose.msra.mxu0 0.0
        %541 = vmatprep.subr.mxu0 0.0
        %542 = vmatpush1.xpose.msra.mxu0 0.0
        %543 = vmatprep.subr.mxu0 0.0
        %544 = vmatpush1.xpose.msra.mxu0 0.0
        %545 = vmatprep.subr.mxu0 0.0
        %546 = vmatpush1.xpose.msra.mxu0 0.0
        %547 = vmatprep.subr.mxu0 0.0
        %548 = vmatpush1.xpose.msra.mxu0 0.0
        %549 = vmatprep.subr.mxu0 0.0
        %550 = vmatpush1.xpose.msra.mxu0 0.0
        %551 = vmatprep.subr.mxu0 0.0
        %552 = vmatpush1.xpose.msra.mxu0 0.0
        %553 = vmatprep.subr.mxu0 0.0
        %554 = vmatpush1.xpose.msra.mxu0 0.0
        %555 = vmatprep.subr.mxu0 0.0
        %556 = vmatpush1.xpose.msra.mxu0 0.0
        %557 = vmatprep.subr.mxu0 0.0
        %558 = vmatpush1.xpose.msra.mxu0 0.0
        %559 = vmatprep.subr.mxu0 0.0
        %560 = vmatpush1.xpose.msra.mxu0 0.0
        %561 = vmatprep.subr.mxu0 0.0
        %562 = vmatpush1.xpose.msra.mxu0 0.0
        %563 = vmatprep.subr.mxu0 0.0
        %564 = vmatpush1.xpose.msra.mxu0 0.0
        %565 = vmatprep.subr.mxu0 0.0
        %566 = vmatpush1.xpose.msra.mxu0 0.0
        %567 = vmatprep.subr.mxu0 0.0
        %568 = vmatpush1.xpose.msra.mxu0 0.0
        %569 = vmatprep.subr.mxu0 0.0
        %570 = vmatpush1.xpose.msra.mxu0 0.0
        %571 = vmatprep.subr.mxu0 0.0
        %572 = vmatpush1.xpose.msra.mxu0 0.0
        %573 = vmatprep.subr.mxu0 0.0
        %574 = vmatpush1.xpose.msra.mxu0 0.0
        %575 = vmatprep.subr.mxu0 0.0
        %576 = vmatpush1.xpose.msra.mxu0 0.0
        %577 = vmatprep.subr.mxu0 0.0
        %578 = vmatpush1.xpose.msra.mxu0 0.0
        %579 = vmatprep.subr.mxu0 0.0
        %580 = vmatpush1.xpose.msra.mxu0 0.0
        %581 = vmatprep.subr.mxu0 0.0
        %582 = vmatpush1.xpose.msra.mxu0 0.0
        %583 = vmatprep.subr.mxu0 0.0
        %584 = vmatpush1.xpose.msra.mxu0 0.0
        %585 = vmatprep.subr.mxu0 0.0
        %586 = vmatpush1.xpose.msra.mxu0 0.0
        %587 = vmatprep.subr.mxu0 0.0
        %588 = vmatpush1.xpose.msra.mxu0 0.0
        %589 = vmatprep.subr.mxu0 0.0
        %590 = vmatpush1.xpose.msra.mxu0 0.0
        %591 = vmatprep.subr.mxu0 0.0
        %592 = vmatpush1.xpose.msra.mxu0 0.0
        %593 = vmatprep.mubr.f32.mxu0 0.0
        %594 = vmatmul.mubr.f32.gmra.mrb[0].mxu0 %v525
        %v595 = vpop.f32.mrb[0].mxu0
        %v596 = vadd.f32 0.0, %v595
        %v597 = vpop.f32.mrb[0].mxu0
        %598 = vdwg.mxu0
        %v600 = vsel %vm448, %v429, 0
        %v602 = vsel %vm448, %v435, 0
        %604 = vmatprep.subr.mxu0 0.0
        %605 = vmatpush1.xpose.msra.mxu0 %v602
        %606 = vmatprep.subr.mxu0 0.0
        %607 = vmatpush1.xpose.msra.mxu0 0.0
        %608 = vmatprep.subr.mxu0 0.0
        %609 = vmatpush1.xpose.msra.mxu0 0.0
        %610 = vmatprep.subr.mxu0 0.0
        %611 = vmatpush1.xpose.msra.mxu0 0.0
        %612 = vmatprep.subr.mxu0 0.0
        %613 = vmatpush1.xpose.msra.mxu0 0.0
        %614 = vmatprep.subr.mxu0 0.0
        %615 = vmatpush1.xpose.msra.mxu0 0.0
        %616 = vmatprep.subr.mxu0 0.0
        %617 = vmatpush1.xpose.msra.mxu0 0.0
        %618 = vmatprep.subr.mxu0 0.0
        %619 = vmatpush1.xpose.msra.mxu0 0.0
        %620 = vmatprep.subr.mxu0 0.0
        %621 = vmatpush1.xpose.msra.mxu0 0.0
        %622 = vmatprep.subr.mxu0 0.0
        %623 = vmatpush1.xpose.msra.mxu0 0.0
        %624 = vmatprep.subr.mxu0 0.0
        %625 = vmatpush1.xpose.msra.mxu0 0.0
        %626 = vmatprep.subr.mxu0 0.0
        %627 = vmatpush1.xpose.msra.mxu0 0.0
        %628 = vmatprep.subr.mxu0 0.0
        %629 = vmatpush1.xpose.msra.mxu0 0.0
        %630 = vmatprep.subr.mxu0 0.0
        %631 = vmatpush1.xpose.msra.mxu0 0.0
        %632 = vmatprep.subr.mxu0 0.0
        %633 = vmatpush1.xpose.msra.mxu0 0.0
        %634 = vmatprep.subr.mxu0 0.0
        %635 = vmatpush1.xpose.msra.mxu0 0.0
        %636 = vmatprep.subr.mxu0 0.0
        %637 = vmatpush1.xpose.msra.mxu0 0.0
        %638 = vmatprep.subr.mxu0 0.0
        %639 = vmatpush1.xpose.msra.mxu0 0.0
        %640 = vmatprep.subr.mxu0 0.0
        %641 = vmatpush1.xpose.msra.mxu0 0.0
        %642 = vmatprep.subr.mxu0 0.0
        %643 = vmatpush1.xpose.msra.mxu0 0.0
        %644 = vmatprep.subr.mxu0 0.0
        %645 = vmatpush1.xpose.msra.mxu0 0.0
        %646 = vmatprep.subr.mxu0 0.0
        %647 = vmatpush1.xpose.msra.mxu0 0.0
        %648 = vmatprep.subr.mxu0 0.0
        %649 = vmatpush1.xpose.msra.mxu0 0.0
        %650 = vmatprep.subr.mxu0 0.0
        %651 = vmatpush1.xpose.msra.mxu0 0.0
        %652 = vmatprep.subr.mxu0 0.0
        %653 = vmatpush1.xpose.msra.mxu0 0.0
        %654 = vmatprep.subr.mxu0 0.0
        %655 = vmatpush1.xpose.msra.mxu0 0.0
        %656 = vmatprep.subr.mxu0 0.0
        %657 = vmatpush1.xpose.msra.mxu0 0.0
        %658 = vmatprep.subr.mxu0 0.0
        %659 = vmatpush1.xpose.msra.mxu0 0.0
        %660 = vmatprep.subr.mxu0 0.0
        %661 = vmatpush1.xpose.msra.mxu0 0.0
        %662 = vmatprep.subr.mxu0 0.0
        %663 = vmatpush1.xpose.msra.mxu0 0.0
        %664 = vmatprep.subr.mxu0 0.0
        %665 = vmatpush1.xpose.msra.mxu0 0.0
        %666 = vmatprep.subr.mxu0 0.0
        %667 = vmatpush1.xpose.msra.mxu0 0.0
        %668 = vmatprep.mubr.f32.mxu0 0.0
        %669 = vmatmul.mubr.f32.gmra.mrb[0].mxu0 %v600
        %v670 = vpop.f32.mrb[0].mxu0
        %v671 = vadd.f32 0.0, %v670
        %v672 = vpop.f32.mrb[0].mxu0
        %673 = vdwg.mxu0
        %v675 = vsel %vm448, %v430, 0
        %v677 = vsel %vm448, %v437, 0
        %679 = vmatprep.subr.mxu0 0.0
        %680 = vmatpush1.xpose.msra.mxu0 %v677
        %681 = vmatprep.subr.mxu0 0.0
        %682 = vmatpush1.xpose.msra.mxu0 0.0
        %683 = vmatprep.subr.mxu0 0.0
        %684 = vmatpush1.xpose.msra.mxu0 0.0
        %685 = vmatprep.subr.mxu0 0.0
        %686 = vmatpush1.xpose.msra.mxu0 0.0
        %687 = vmatprep.subr.mxu0 0.0
        %688 = vmatpush1.xpose.msra.mxu0 0.0
        %689 = vmatprep.subr.mxu0 0.0
        %690 = vmatpush1.xpose.msra.mxu0 0.0
        %691 = vmatprep.subr.mxu0 0.0
        %692 = vmatpush1.xpose.msra.mxu0 0.0
        %693 = vmatprep.subr.mxu0 0.0
        %694 = vmatpush1.xpose.msra.mxu0 0.0
        %695 = vmatprep.subr.mxu0 0.0
        %696 = vmatpush1.xpose.msra.mxu0 0.0
        %697 = vmatprep.subr.mxu0 0.0
        %698 = vmatpush1.xpose.msra.mxu0 0.0
        %699 = vmatprep.subr.mxu0 0.0
        %700 = vmatpush1.xpose.msra.mxu0 0.0
        %701 = vmatprep.subr.mxu0 0.0
        %702 = vmatpush1.xpose.msra.mxu0 0.0
        %703 = vmatprep.subr.mxu0 0.0
        %704 = vmatpush1.xpose.msra.mxu0 0.0
        %705 = vmatprep.subr.mxu0 0.0
        %706 = vmatpush1.xpose.msra.mxu0 0.0
        %707 = vmatprep.subr.mxu0 0.0
        %708 = vmatpush1.xpose.msra.mxu0 0.0
        %709 = vmatprep.subr.mxu0 0.0
        %710 = vmatpush1.xpose.msra.mxu0 0.0
        %711 = vmatprep.subr.mxu0 0.0
        %712 = vmatpush1.xpose.msra.mxu0 0.0
        %713 = vmatprep.subr.mxu0 0.0
        %714 = vmatpush1.xpose.msra.mxu0 0.0
        %715 = vmatprep.subr.mxu0 0.0
        %716 = vmatpush1.xpose.msra.mxu0 0.0
        %717 = vmatprep.subr.mxu0 0.0
        %718 = vmatpush1.xpose.msra.mxu0 0.0
        %719 = vmatprep.subr.mxu0 0.0
        %720 = vmatpush1.xpose.msra.mxu0 0.0
        %721 = vmatprep.subr.mxu0 0.0
        %722 = vmatpush1.xpose.msra.mxu0 0.0
        %723 = vmatprep.subr.mxu0 0.0
        %724 = vmatpush1.xpose.msra.mxu0 0.0
        %725 = vmatprep.subr.mxu0 0.0
        %726 = vmatpush1.xpose.msra.mxu0 0.0
        %727 = vmatprep.subr.mxu0 0.0
        %728 = vmatpush1.xpose.msra.mxu0 0.0
        %729 = vmatprep.subr.mxu0 0.0
        %730 = vmatpush1.xpose.msra.mxu0 0.0
        %731 = vmatprep.subr.mxu0 0.0
        %732 = vmatpush1.xpose.msra.mxu0 0.0
        %733 = vmatprep.subr.mxu0 0.0
        %734 = vmatpush1.xpose.msra.mxu0 0.0
        %735 = vmatprep.subr.mxu0 0.0
        %736 = vmatpush1.xpose.msra.mxu0 0.0
        %737 = vmatprep.subr.mxu0 0.0
        %738 = vmatpush1.xpose.msra.mxu0 0.0
        %739 = vmatprep.subr.mxu0 0.0
        %740 = vmatpush1.xpose.msra.mxu0 0.0
        %741 = vmatprep.subr.mxu0 0.0
        %742 = vmatpush1.xpose.msra.mxu0 0.0
        %743 = vmatprep.mubr.f32.mxu0 0.0
        %744 = vmatmul.mubr.f32.gmra.mrb[0].mxu0 %v675
        %v745 = vpop.f32.mrb[0].mxu0
        %v746 = vadd.f32 0.0, %v745
        %v747 = vpop.f32.mrb[0].mxu0
        %748 = vdwg.mxu0
        %v749 = vsel %vm416, 1, 0
        %vm750 = vcmp.eq.s32.totalorder %v749, 1
        %v751 = vsel %vm750, -1e+30, %v521
        %v752 = vsel %vm750, -1e+30, %v596
        %v753 = vsel %vm750, -1e+30, %v671
        %v754 = vsel %vm750, -1e+30, %v746
        %vm755 = vcmask 64512
        %v756 = vsel %vm755, %v751, -inf
        %757 = vmax.xlane.f32.xlu0 %v756
        %v758 = vpop.xlane.xlu0 %757
        %v759 = vsel %vm755, %v752, -inf
        %760 = vmax.xlane.f32.xlu0 %v759
        %v761 = vpop.xlane.xlu0 %760
        %v762 = vsel %vm755, %v753, -inf
        %763 = vmax.xlane.f32.xlu0 %v762
        %v764 = vpop.xlane.xlu0 %763
        %v765 = vsel %vm755, %v754, -inf
        %766 = vmax.xlane.f32.xlu0 %v765
        %v767 = vpop.xlane.xlu0 %766
        %v768 = vsub.f32 %v751, %v758
        %v769 = vsub.f32 %v752, %v761
        %v770 = vsub.f32 %v753, %v764
        %v771 = vsub.f32 %v754, %v767
        %v772 = vmul.f32 %v768, 1.442695
        %v773 = vpow.pop %v772
        %v774 = vmul.f32 %v769, 1.442695
        %v775 = vpow.pop %v774
        %v776 = vmul.f32 %v770, 1.442695
        %v777 = vpow.pop %v776
        %v778 = vmul.f32 %v771, 1.442695
        %v779 = vpow.pop %v778
        %v780 = vsel %vm755, %v773, 0.0
        %781 = vadd.xlane.f32.xlu0 %v780
        %v782 = vpop.xlane.xlu0 %781
        %v783 = vsel %vm755, %v775, 0.0
        %784 = vadd.xlane.f32.xlu0 %v783
        %v785 = vpop.xlane.xlu0 %784
        %v786 = vsel %vm755, %v777, 0.0
        %787 = vadd.xlane.f32.xlu0 %v786
        %v788 = vpop.xlane.xlu0 %787
        %v789 = vsel %vm755, %v779, 0.0
        %790 = vadd.xlane.f32.xlu0 %v789
        %v791 = vpop.xlane.xlu0 %790
        %v793 = vsel %vm755, %v773, 0
        %795 = vmatprep.subr.mxu0 0.0
        %796 = vmatpush1.msra.mxu0 %v409
        %797 = vmatprep.subr.mxu0 0.0
        %798 = vmatpush1.msra.mxu0 0.0
        %799 = vmatprep.subr.mxu0 0.0
        %800 = vmatpush1.msra.mxu0 0.0
        %801 = vmatprep.subr.mxu0 0.0
        %802 = vmatpush1.msra.mxu0 0.0
        %803 = vmatprep.subr.mxu0 0.0
        %804 = vmatpush1.msra.mxu0 0.0
        %805 = vmatprep.subr.mxu0 0.0
        %806 = vmatpush1.msra.mxu0 0.0
        %807 = vmatprep.subr.mxu0 0.0
        %808 = vmatpush1.msra.mxu0 0.0
        %809 = vmatprep.subr.mxu0 0.0
        %810 = vmatpush1.msra.mxu0 0.0
        %811 = vmatprep.subr.mxu0 0.0
        %812 = vmatpush1.msra.mxu0 0.0
        %813 = vmatprep.subr.mxu0 0.0
        %814 = vmatpush1.msra.mxu0 0.0
        %815 = vmatprep.subr.mxu0 0.0
        %816 = vmatpush1.msra.mxu0 0.0
        %817 = vmatprep.subr.mxu0 0.0
        %818 = vmatpush1.msra.mxu0 0.0
        %819 = vmatprep.subr.mxu0 0.0
        %820 = vmatpush1.msra.mxu0 0.0
        %821 = vmatprep.subr.mxu0 0.0
        %822 = vmatpush1.msra.mxu0 0.0
        %823 = vmatprep.subr.mxu0 0.0
        %824 = vmatpush1.msra.mxu0 0.0
        %825 = vmatprep.subr.mxu0 0.0
        %826 = vmatpush1.msra.mxu0 0.0
        %827 = vmatprep.subr.mxu0 0.0
        %828 = vmatpush1.msra.mxu0 0.0
        %829 = vmatprep.subr.mxu0 0.0
        %830 = vmatpush1.msra.mxu0 0.0
        %831 = vmatprep.subr.mxu0 0.0
        %832 = vmatpush1.msra.mxu0 0.0
        %833 = vmatprep.subr.mxu0 0.0
        %834 = vmatpush1.msra.mxu0 0.0
        %835 = vmatprep.subr.mxu0 0.0
        %836 = vmatpush1.msra.mxu0 0.0
        %837 = vmatprep.subr.mxu0 0.0
        %838 = vmatpush1.msra.mxu0 0.0
        %839 = vmatprep.subr.mxu0 0.0
        %840 = vmatpush1.msra.mxu0 0.0
        %841 = vmatprep.subr.mxu0 0.0
        %842 = vmatpush1.msra.mxu0 0.0
        %843 = vmatprep.subr.mxu0 0.0
        %844 = vmatpush1.msra.mxu0 0.0
        %845 = vmatprep.subr.mxu0 0.0
        %846 = vmatpush1.msra.mxu0 0.0
        %847 = vmatprep.subr.mxu0 0.0
        %848 = vmatpush1.msra.mxu0 0.0
        %849 = vmatprep.subr.mxu0 0.0
        %850 = vmatpush1.msra.mxu0 0.0
        %851 = vmatprep.subr.mxu0 0.0
        %852 = vmatpush1.msra.mxu0 0.0
        %853 = vmatprep.subr.mxu0 0.0
        %854 = vmatpush1.msra.mxu0 0.0
        %855 = vmatprep.subr.mxu0 0.0
        %856 = vmatpush1.msra.mxu0 0.0
        %857 = vmatprep.subr.mxu0 0.0
        %858 = vmatpush1.msra.mxu0 0.0
        %859 = vmatprep.mubr.f32.mxu0 0.0
        %860 = vmatmul.mubr.f32.gmra.mrb[0].mxu0 %v793
        %v861 = vpop.f32.mrb[0].mxu0
        %v862 = vadd.f32 0.0, %v861
        %v863 = vpop.f32.mrb[0].mxu0
        %864 = vdwg.mxu0
        %v866 = vsel %vm755, %v775, 0
        %868 = vmatprep.subr.mxu0 0.0
        %869 = vmatpush1.msra.mxu0 %v440
        %870 = vmatprep.subr.mxu0 0.0
        %871 = vmatpush1.msra.mxu0 0.0
        %872 = vmatprep.subr.mxu0 0.0
        %873 = vmatpush1.msra.mxu0 0.0
        %874 = vmatprep.subr.mxu0 0.0
        %875 = vmatpush1.msra.mxu0 0.0
        %876 = vmatprep.subr.mxu0 0.0
        %877 = vmatpush1.msra.mxu0 0.0
        %878 = vmatprep.subr.mxu0 0.0
        %879 = vmatpush1.msra.mxu0 0.0
        %880 = vmatprep.subr.mxu0 0.0
        %881 = vmatpush1.msra.mxu0 0.0
        %882 = vmatprep.subr.mxu0 0.0
        %883 = vmatpush1.msra.mxu0 0.0
        %884 = vmatprep.subr.mxu0 0.0
        %885 = vmatpush1.msra.mxu0 0.0
        %886 = vmatprep.subr.mxu0 0.0
        %887 = vmatpush1.msra.mxu0 0.0
        %888 = vmatprep.subr.mxu0 0.0
        %889 = vmatpush1.msra.mxu0 0.0
        %890 = vmatprep.subr.mxu0 0.0
        %891 = vmatpush1.msra.mxu0 0.0
        %892 = vmatprep.subr.mxu0 0.0
        %893 = vmatpush1.msra.mxu0 0.0
        %894 = vmatprep.subr.mxu0 0.0
        %895 = vmatpush1.msra.mxu0 0.0
        %896 = vmatprep.subr.mxu0 0.0
        %897 = vmatpush1.msra.mxu0 0.0
        %898 = vmatprep.subr.mxu0 0.0
        %899 = vmatpush1.msra.mxu0 0.0
        %900 = vmatprep.subr.mxu0 0.0
        %901 = vmatpush1.msra.mxu0 0.0
        %902 = vmatprep.subr.mxu0 0.0
        %903 = vmatpush1.msra.mxu0 0.0
        %904 = vmatprep.subr.mxu0 0.0
        %905 = vmatpush1.msra.mxu0 0.0
        %906 = vmatprep.subr.mxu0 0.0
        %907 = vmatpush1.msra.mxu0 0.0
        %908 = vmatprep.subr.mxu0 0.0
        %909 = vmatpush1.msra.mxu0 0.0
        %910 = vmatprep.subr.mxu0 0.0
        %911 = vmatpush1.msra.mxu0 0.0
        %912 = vmatprep.subr.mxu0 0.0
        %913 = vmatpush1.msra.mxu0 0.0
        %914 = vmatprep.subr.mxu0 0.0
        %915 = vmatpush1.msra.mxu0 0.0
        %916 = vmatprep.subr.mxu0 0.0
        %917 = vmatpush1.msra.mxu0 0.0
        %918 = vmatprep.subr.mxu0 0.0
        %919 = vmatpush1.msra.mxu0 0.0
        %920 = vmatprep.subr.mxu0 0.0
        %921 = vmatpush1.msra.mxu0 0.0
        %922 = vmatprep.subr.mxu0 0.0
        %923 = vmatpush1.msra.mxu0 0.0
        %924 = vmatprep.subr.mxu0 0.0
        %925 = vmatpush1.msra.mxu0 0.0
        %926 = vmatprep.subr.mxu0 0.0
        %927 = vmatpush1.msra.mxu0 0.0
        %928 = vmatprep.subr.mxu0 0.0
        %929 = vmatpush1.msra.mxu0 0.0
        %930 = vmatprep.subr.mxu0 0.0
        %931 = vmatpush1.msra.mxu0 0.0
        %932 = vmatprep.mubr.f32.mxu0 0.0
        %933 = vmatmul.mubr.f32.gmra.mrb[0].mxu0 %v866
        %v934 = vpop.f32.mrb[0].mxu0
        %v935 = vadd.f32 0.0, %v934
        %v936 = vpop.f32.mrb[0].mxu0
        %937 = vdwg.mxu0
        %v939 = vsel %vm755, %v777, 0
        %941 = vmatprep.subr.mxu0 0.0
        %942 = vmatpush1.msra.mxu0 %v443
        %943 = vmatprep.subr.mxu0 0.0
        %944 = vmatpush1.msra.mxu0 0.0
        %945 = vmatprep.subr.mxu0 0.0
        %946 = vmatpush1.msra.mxu0 0.0
        %947 = vmatprep.subr.mxu0 0.0
        %948 = vmatpush1.msra.mxu0 0.0
        %949 = vmatprep.subr.mxu0 0.0
        %950 = vmatpush1.msra.mxu0 0.0
        %951 = vmatprep.subr.mxu0 0.0
        %952 = vmatpush1.msra.mxu0 0.0
        %953 = vmatprep.subr.mxu0 0.0
        %954 = vmatpush1.msra.mxu0 0.0
        %955 = vmatprep.subr.mxu0 0.0
        %956 = vmatpush1.msra.mxu0 0.0
        %957 = vmatprep.subr.mxu0 0.0
        %958 = vmatpush1.msra.mxu0 0.0
        %959 = vmatprep.subr.mxu0 0.0
        %960 = vmatpush1.msra.mxu0 0.0
        %961 = vmatprep.subr.mxu0 0.0
        %962 = vmatpush1.msra.mxu0 0.0
        %963 = vmatprep.subr.mxu0 0.0
        %964 = vmatpush1.msra.mxu0 0.0
        %965 = vmatprep.subr.mxu0 0.0
        %966 = vmatpush1.msra.mxu0 0.0
        %967 = vmatprep.subr.mxu0 0.0
        %968 = vmatpush1.msra.mxu0 0.0
        %969 = vmatprep.subr.mxu0 0.0
        %970 = vmatpush1.msra.mxu0 0.0
        %971 = vmatprep.subr.mxu0 0.0
        %972 = vmatpush1.msra.mxu0 0.0
        %973 = vmatprep.subr.mxu0 0.0
        %974 = vmatpush1.msra.mxu0 0.0
        %975 = vmatprep.subr.mxu0 0.0
        %976 = vmatpush1.msra.mxu0 0.0
        %977 = vmatprep.subr.mxu0 0.0
        %978 = vmatpush1.msra.mxu0 0.0
        %979 = vmatprep.subr.mxu0 0.0
        %980 = vmatpush1.msra.mxu0 0.0
        %981 = vmatprep.subr.mxu0 0.0
        %982 = vmatpush1.msra.mxu0 0.0
        %983 = vmatprep.subr.mxu0 0.0
        %984 = vmatpush1.msra.mxu0 0.0
        %985 = vmatprep.subr.mxu0 0.0
        %986 = vmatpush1.msra.mxu0 0.0
        %987 = vmatprep.subr.mxu0 0.0
        %988 = vmatpush1.msra.mxu0 0.0
        %989 = vmatprep.subr.mxu0 0.0
        %990 = vmatpush1.msra.mxu0 0.0
        %991 = vmatprep.subr.mxu0 0.0
        %992 = vmatpush1.msra.mxu0 0.0
        %993 = vmatprep.subr.mxu0 0.0
        %994 = vmatpush1.msra.mxu0 0.0
        %995 = vmatprep.subr.mxu0 0.0
        %996 = vmatpush1.msra.mxu0 0.0
        %997 = vmatprep.subr.mxu0 0.0
        %998 = vmatpush1.msra.mxu0 0.0
        %999 = vmatprep.subr.mxu0 0.0
        %1000 = vmatpush1.msra.mxu0 0.0
        %1001 = vmatprep.subr.mxu0 0.0
        %1002 = vmatpush1.msra.mxu0 0.0
        %1003 = vmatprep.subr.mxu0 0.0
        %1004 = vmatpush1.msra.mxu0 0.0
        %1005 = vmatprep.mubr.f32.mxu0 0.0
        %1006 = vmatmul.mubr.f32.gmra.mrb[0].mxu0 %v939
        %v1007 = vpop.f32.mrb[0].mxu0
        %v1008 = vadd.f32 0.0, %v1007
        %v1009 = vpop.f32.mrb[0].mxu0
        %1010 = vdwg.mxu0
        %v1012 = vsel %vm755, %v779, 0
        %1014 = vmatprep.subr.mxu0 0.0
        %1015 = vmatpush1.msra.mxu0 %v446
        %1016 = vmatprep.subr.mxu0 0.0
        %1017 = vmatpush1.msra.mxu0 0.0
        %1018 = vmatprep.subr.mxu0 0.0
        %1019 = vmatpush1.msra.mxu0 0.0
        %1020 = vmatprep.subr.mxu0 0.0
        %1021 = vmatpush1.msra.mxu0 0.0
        %1022 = vmatprep.subr.mxu0 0.0
        %1023 = vmatpush1.msra.mxu0 0.0
        %1024 = vmatprep.subr.mxu0 0.0
        %1025 = vmatpush1.msra.mxu0 0.0
        %1026 = vmatprep.subr.mxu0 0.0
        %1027 = vmatpush1.msra.mxu0 0.0
        %1028 = vmatprep.subr.mxu0 0.0
        %1029 = vmatpush1.msra.mxu0 0.0
        %1030 = vmatprep.subr.mxu0 0.0
        %1031 = vmatpush1.msra.mxu0 0.0
        %1032 = vmatprep.subr.mxu0 0.0
        %1033 = vmatpush1.msra.mxu0 0.0
        %1034 = vmatprep.subr.mxu0 0.0
        %1035 = vmatpush1.msra.mxu0 0.0
        %1036 = vmatprep.subr.mxu0 0.0
        %1037 = vmatpush1.msra.mxu0 0.0
        %1038 = vmatprep.subr.mxu0 0.0
        %1039 = vmatpush1.msra.mxu0 0.0
        %1040 = vmatprep.subr.mxu0 0.0
        %1041 = vmatpush1.msra.mxu0 0.0
        %1042 = vmatprep.subr.mxu0 0.0
        %1043 = vmatpush1.msra.mxu0 0.0
        %1044 = vmatprep.subr.mxu0 0.0
        %1045 = vmatpush1.msra.mxu0 0.0
        %1046 = vmatprep.subr.mxu0 0.0
        %1047 = vmatpush1.msra.mxu0 0.0
        %1048 = vmatprep.subr.mxu0 0.0
        %1049 = vmatpush1.msra.mxu0 0.0
        %1050 = vmatprep.subr.mxu0 0.0
        %1051 = vmatpush1.msra.mxu0 0.0
        %1052 = vmatprep.subr.mxu0 0.0
        %1053 = vmatpush1.msra.mxu0 0.0
        %1054 = vmatprep.subr.mxu0 0.0
        %1055 = vmatpush1.msra.mxu0 0.0
        %1056 = vmatprep.subr.mxu0 0.0
        %1057 = vmatpush1.msra.mxu0 0.0
        %1058 = vmatprep.subr.mxu0 0.0
        %1059 = vmatpush1.msra.mxu0 0.0
        %1060 = vmatprep.subr.mxu0 0.0
        %1061 = vmatpush1.msra.mxu0 0.0
        %1062 = vmatprep.subr.mxu0 0.0
        %1063 = vmatpush1.msra.mxu0 0.0
        %1064 = vmatprep.subr.mxu0 0.0
        %1065 = vmatpush1.msra.mxu0 0.0
        %1066 = vmatprep.subr.mxu0 0.0
        %1067 = vmatpush1.msra.mxu0 0.0
        %1068 = vmatprep.subr.mxu0 0.0
        %1069 = vmatpush1.msra.mxu0 0.0
        %1070 = vmatprep.subr.mxu0 0.0
        %1071 = vmatpush1.msra.mxu0 0.0
        %1072 = vmatprep.subr.mxu0 0.0
        %1073 = vmatpush1.msra.mxu0 0.0
        %1074 = vmatprep.subr.mxu0 0.0
        %1075 = vmatpush1.msra.mxu0 0.0
        %1076 = vmatprep.subr.mxu0 0.0
        %1077 = vmatpush1.msra.mxu0 0.0
        %1078 = vmatprep.mubr.f32.mxu0 0.0
        %1079 = vmatmul.mubr.f32.gmra.mrb[0].mxu0 %v1012
        %v1080 = vpop.f32.mrb[0].mxu0
        %v1081 = vadd.f32 0.0, %v1080
        %v1082 = vpop.f32.mrb[0].mxu0
        %1083 = vdwg.mxu0
        %v1084 = vrcp.pop %v782
        %v1085 = vrcp.pop %v785
        %v1086 = vrcp.pop %v788
        %v1087 = vrcp.pop %v791
        %v1088 = vmul.f32 %v862, %v1084
        %v1089 = vmul.f32 %v935, %v1085
        %v1090 = vmul.f32 %v1008, %v1086
        %v1091 = vmul.f32 %v1081, %v1087
        %1093 = vrot.lane.b32.xlu0 %v1089, 32
        %v1094 = vpop.permute.xlu0 %1093
        %1097 = vrot.lane.b32.xlu0 %v1090, 64
        %v1098 = vpop.permute.xlu0 %1097
        %1101 = vrot.lane.b32.xlu0 %v1091, 96
        %v1102 = vpop.permute.xlu0 %1101
        %v1104 = vsel %vm448, %v1088, %v1094
        %v1105 = vsel %vm267, %v1104, %v1098
        %vm1106 = vcmask 785408
        %v1107 = vsel %vm1106, %v1105, %v1102
        %v1108 = vld [vmem:[#allocation7] sm:$0xff]
        %v1109 = vld [vmem:[#allocation7 + $0x8] sm:$0xff]
        %v1110 = vld [vmem:[#allocation7 + $0x10] sm:$0xff]
        %v1111 = vld [vmem:[#allocation7 + $0x18] sm:$0xff]
        %v1112 = vld [vmem:[#allocation7 + $0x20] sm:$0xff]
        %v1113 = vld [vmem:[#allocation7 + $0x28] sm:$0xff]
        %v1114 = vld [vmem:[#allocation7 + $0x30] sm:$0xff]
        %v1115 = vld [vmem:[#allocation7 + $0x38] sm:$0xff]
        %v1116 = vld [vmem:[#allocation7 + $0x40] sm:$0xff]
        %v1117 = vld [vmem:[#allocation7 + $0x48] sm:$0xff]
        %v1118 = vld [vmem:[#allocation7 + $0x50] sm:$0xff]
        %v1119 = vld [vmem:[#allocation7 + $0x58] sm:$0xff]
        %v1120 = vld [vmem:[#allocation7 + $0x60] sm:$0xff]
        %v1121 = vld [vmem:[#allocation7 + $0x68] sm:$0xff]
        %v1122 = vld [vmem:[#allocation7 + $0x70] sm:$0xff]
        %v1123 = vld [vmem:[#allocation7 + $0x78] sm:$0xff]
        %v1124 = vld [vmem:[%s3] sm:$0x1]
        %v1126 = vlaneseq
        %v1127 = vshrl.u32 %v1126, 7
        %v1128 = vsub.s32 0, %v1127
        %v1129 = vrot.slane %v1124, %v1128
        %1131 = vmatprep.subr.mxu0 0.0
        %1132 = vmatpush1.msra.mxu0 %v1108
        %1133 = vmatprep.subr.mxu0 0.0
        %1134 = vmatpush1.msra.mxu0 %v1109
        %1135 = vmatprep.subr.mxu0 0.0
        %1136 = vmatpush1.msra.mxu0 %v1110
        %1137 = vmatprep.subr.mxu0 0.0
        %1138 = vmatpush1.msra.mxu0 %v1111
        %1139 = vmatprep.subr.mxu0 0.0
        %1140 = vmatpush1.msra.mxu0 %v1112
        %1141 = vmatprep.subr.mxu0 0.0
        %1142 = vmatpush1.msra.mxu0 %v1113
        %1143 = vmatprep.subr.mxu0 0.0
        %1144 = vmatpush1.msra.mxu0 %v1114
        %1145 = vmatprep.subr.mxu0 0.0
        %1146 = vmatpush1.msra.mxu0 %v1115
        %1147 = vmatprep.subr.mxu0 0.0
        %1148 = vmatpush1.msra.mxu0 %v1116
        %1149 = vmatprep.subr.mxu0 0.0
        %1150 = vmatpush1.msra.mxu0 %v1117
        %1151 = vmatprep.subr.mxu0 0.0
        %1152 = vmatpush1.msra.mxu0 %v1118
        %1153 = vmatprep.subr.mxu0 0.0
        %1154 = vmatpush1.msra.mxu0 %v1119
        %1155 = vmatprep.subr.mxu0 0.0
        %1156 = vmatpush1.msra.mxu0 %v1120
        %1157 = vmatprep.subr.mxu0 0.0
        %1158 = vmatpush1.msra.mxu0 %v1121
        %1159 = vmatprep.subr.mxu0 0.0
        %1160 = vmatpush1.msra.mxu0 %v1122
        %1161 = vmatprep.subr.mxu0 0.0
        %1162 = vmatpush1.msra.mxu0 %v1123
        %1163 = vmatprep.subr.mxu0 0.0
        %1164 = vmatpush1.msra.mxu0 0.0
        %1165 = vmatprep.subr.mxu0 0.0
        %1166 = vmatpush1.msra.mxu0 0.0
        %1167 = vmatprep.subr.mxu0 0.0
        %1168 = vmatpush1.msra.mxu0 0.0
        %1169 = vmatprep.subr.mxu0 0.0
        %1170 = vmatpush1.msra.mxu0 0.0
        %1171 = vmatprep.subr.mxu0 0.0
        %1172 = vmatpush1.msra.mxu0 0.0
        %1173 = vmatprep.subr.mxu0 0.0
        %1174 = vmatpush1.msra.mxu0 0.0
        %1175 = vmatprep.subr.mxu0 0.0
        %1176 = vmatpush1.msra.mxu0 0.0
        %1177 = vmatprep.subr.mxu0 0.0
        %1178 = vmatpush1.msra.mxu0 0.0
        %1179 = vmatprep.subr.mxu0 0.0
        %1180 = vmatpush1.msra.mxu0 0.0
        %1181 = vmatprep.subr.mxu0 0.0
        %1182 = vmatpush1.msra.mxu0 0.0
        %1183 = vmatprep.subr.mxu0 0.0
        %1184 = vmatpush1.msra.mxu0 0.0
        %1185 = vmatprep.subr.mxu0 0.0
        %1186 = vmatpush1.msra.mxu0 0.0
        %1187 = vmatprep.subr.mxu0 0.0
        %1188 = vmatpush1.msra.mxu0 0.0
        %1189 = vmatprep.subr.mxu0 0.0
        %1190 = vmatpush1.msra.mxu0 0.0
        %1191 = vmatprep.subr.mxu0 0.0
        %1192 = vmatpush1.msra.mxu0 0.0
        %1193 = vmatprep.subr.mxu0 0.0
        %1194 = vmatpush1.msra.mxu0 0.0
        %1195 = vmatprep.mubr.f32.mxu0 0.0
        %1196 = vmatmul.mubr.f32.gmra.mrb[0].mxu0 %v1107
        %v1197 = vpop.f32.mrb[0].mxu0
        %v1198 = vadd.f32 %v1129, %v1197
        %v1199 = vpop.f32.mrb[0].mxu0
        %1200 = vdwg.mxu0
        %1201 = vst [vmem:[%s241] sm:$0xff] %v1198
        %s1202 = sand.u32 %s119, 1
        %s1203 = scalar_lea.sflag [#allocation4], %s1202
        %s1204 = sand.u32 %s119, 1
        %s1205 = smul.addr %s1204, 8
        %s1206 = scalar_lea.vmem [#allocation8], %s1205
        // Predicated region
        $region49: #{tpu_custom_call.1} parent=35 // pred_check
          %p1207 = pneg %p129
        $region50: #{tpu_custom_call.1} parent=35 // pred_check_branch
          %1209 = sbr.rel (%p1207) target = $region52
        $region51: #{tpu_custom_call.1} parent=35 // pred_region
          %s1211 = ssub.s32 128, 128
          %1212 = vsyncadd %s1203, %s1211
          %s1213 = smul.addr %s22, 128
          %s1214 = scalar_lea.hbm %s4, %s1213
          %s1216 = sshll.u32 %s1206, 4
          %s1217 = int_to_ptr.vmem [resolvable:$true] %s1216
          %1219 = dma.vmem_to_hbm [thread:$0]  %s1217, 128, %s1214, %s1203
        $region52: #{tpu_custom_call.1} parent=35 // pred_fallthru
          _
      $region36: #{tpu_custom_call.1} parent=5 // pred_fallthru
        _
      %p1220 = scmp.le.s32.totalorder 2, %s17
      // Predicated region
      $region53: #{tpu_custom_call.1} parent=5 // pred_check
        %p1221 = pneg %p1220
      $region54: #{tpu_custom_call.1} parent=5 // pred_check_branch
        %1223 = sbr.rel (%p1221) target = $region56
      $region55: #{tpu_custom_call.1} parent=5 // pred_region
        %s1224 = ssub.s32 %s17, 2
        // Predicated region
        $region57: #{tpu_custom_call.1} parent=55 // pred_check
          %p1225 = pneg %p135
        $region58: #{tpu_custom_call.1} parent=55 // pred_check_branch
          %1227 = sbr.rel (%p1225) target = $region60
        $region59: #{tpu_custom_call.1} parent=55 // pred_region
          %s1228 = sand.u32 %s120, 1
          %s1229 = scalar_lea.sflag [#allocation4], %s1228
          %s1230 = sand.u32 %s120, 1
          %s1231 = smul.addr %s1230, 8
          %s1232 = scalar_lea.vmem [#allocation8], %s1231
          %1233 = dma.done %s1229, 128
        $region60: #{tpu_custom_call.1} parent=55 // pred_fallthru
          _
      $region56: #{tpu_custom_call.1} parent=5 // pred_fallthru
        _
    $region6: #{tpu_custom_call.1} parent=1 // loop_footer
      %s21 = sadd.s32 1, %s17
    $region7: #{tpu_custom_call.1} parent=1 // loop_footer_branch
      %16 = sbr.rel target = $region3
    $region8: #{tpu_custom_call.1} parent=1 // loop_exit
      _
    %1234 = vsyncpa [#allocation3], 1
    %s1235 = scalar_lea.sflag [#allocation3], 1
    %1236 = vsyncpa %s1235, 1
    %1237 = vsyncpa [#allocation6], 1
    %1238 = vsyncpa [#allocation4], 1
    %s1239 = scalar_lea.sflag [#allocation4], 1
    %1240 = vsyncpa %s1239, 1

</llo_original>
